<compile_context>
chip_gen: v6e
topology: v6e:2x2x1
jax: 0.10.0
libtpu: 0.0.40
codegen_flags: <defaults>
</compile_context>

<pallas_src>
import math

import jax
import jax.numpy as jnp
from jax.experimental import pallas as pl
from jax.experimental.pallas import tpu as pltpu


def _add_pe_kernel(x_ref, pe_ref, o_ref):
    # x_ref / o_ref: (tb, tl) tiles of the lane-flattened (B, S*D) arrays.
    # pe_ref: (1, tl) float32 tile, broadcast across the batch sublanes.
    # Accumulate in f32 (matches PyTorch's x + f32-buffer promotion), cast on store.
    o_ref[...] = (x_ref[...].astype(jnp.float32) + pe_ref[...]).astype(o_ref.dtype)


def make_pe_table(d_model: int, max_len: int = 5000) -> jax.Array:
    """Sinusoidal PE buffer, identical to the PyTorch __init__ (float32)."""
    position = jnp.arange(0.0, max_len, dtype=jnp.float32)[:, None]          # (max_len, 1)
    div_term = jnp.exp(
        jnp.arange(0.0, d_model, 2, dtype=jnp.float32)
        * -(math.log(10000.0) / d_model)
    )                                                                         # (ceil(D/2),)
    angles = position * div_term                                              # (max_len, ceil(D/2))
    pe = jnp.zeros((max_len, d_model), dtype=jnp.float32)
    pe = pe.at[:, 0::2].set(jnp.sin(angles))
    cos = jnp.cos(angles)
    pe = pe.at[:, 1::2].set(cos[:, : d_model // 2] if d_model % 2 else cos)
    return pe


def _round_up(n: int, m: int) -> int:
    return ((n + m - 1) // m) * m


def _target_tile_bytes() -> int:
    # ~2 MiB tiles already saturate v5e's ~0.8 TB/s HBM and keep the
    # double-buffered pipeline (x + out + pe) inside its 16 MiB scoped-VMEM
    # default; v6e/v7x (1.4-3.2 TB/s HBM, 32 MiB scoped default) want ~4 MiB
    # tiles so the ~0.35 us/step pipeline overhead drops to ~5-10%.
    try:
        kind = jax.devices()[0].device_kind.lower()
    except Exception:
        return 2 << 20
    if "v6" in kind or "v7" in kind:
        return 4 << 20
    return 2 << 20


def positional_encoding_forward(x: jax.Array, pe_row: jax.Array,
                                *, donate_x: bool = False) -> jax.Array:
    """x: (B, S, D); pe_row: (1, S*D) float32.  Returns x + pe[:S] (dropout p=0)."""
    B, S, D = x.shape
    L = S * D
    assert pe_row.shape == (1, L), (pe_row.shape, (1, L))
    assert pe_row.dtype == jnp.float32
    dtype = x.dtype
    itemsize = jnp.dtype(dtype).itemsize

    # (S, D) flattened into one lane-dense last axis.  No padding / slicing:
    # only boundary tiles (if any) take masked partial loads/stores.
    x2 = x.reshape(B, L)

    # Sublane-packing-aware batch tile: 8 rows for 4-byte dtypes, 16 for
    # 2-byte, 32 for 1-byte (or the full batch if smaller).
    packing = max(1, 4 // itemsize)
    tb_max = 8 * packing
    tb = B if B <= tb_max else tb_max

    tile_bytes = _target_tile_bytes()
    lane_cap = max(128, (tile_bytes // (tb * itemsize)) // 128 * 128)

    total_bytes = B * L * itemsize
    if L <= lane_cap:
        if B <= tb and total_bytes > (2 << 20):
            # Mid-size input that would otherwise collapse to a (1, 1) grid:
            # split the lane axis so both of v7x's TensorCores get work.
            tl = _round_up(-(-L // 2), 128)
        else:
            tl = L  # full-extent lane block: unmasked stores, PE fetched once
    else:
        tl = lane_cap

    # Lane axis outermost, batch innermost: the PE tile's block index (0, l)
    # is unchanged across consecutive (inner) steps, so Pallas skips the
    # re-fetch and the PE row is DMA'd once per lane tile.
    grid = (pl.cdiv(L, tl), pl.cdiv(B, tb))

    out2 = pl.pallas_call(
        _add_pe_kernel,
        out_shape=jax.ShapeDtypeStruct((B, L), dtype),
        grid_spec=pltpu.PrefetchScalarGridSpec(
            num_scalar_prefetch=0,
            grid=grid,
            in_specs=[
                pl.BlockSpec((tb, tl), lambda l, b: (b, l)),  # x tile
                pl.BlockSpec((1, tl), lambda l, b: (0, l)),   # shared f32 PE tile
            ],
            out_specs=pl.BlockSpec((tb, tl), lambda l, b: (b, l)),
        ),
        compiler_params=pltpu.CompilerParams(
            dimension_semantics=("parallel", "parallel"),
        ),
        input_output_aliases={0: 0} if donate_x else {},
    )(x2, pe_row)

    return out2.reshape(B, S, D)


class PositionalEncodingPallas:
    """Pallas port of the PyTorch PositionalEncoding module (dropout p=0)."""

    def __init__(self, d_model: int, dropout: float = 0.0, max_len: int = 5000):
        # TODO(synk): dropout with p>0 would need pltpu.prng_seed/prng_random_bits;
        # the reference instantiation PositionalEncoding(20, 0) uses p=0 (identity).
        assert dropout == 0.0, "only the p=0 (identity) dropout path is implemented"
        self.d_model = d_model
        self.max_len = max_len
        self.pe = make_pe_table(d_model, max_len)  # (max_len, d_model) float32
        self._pe_row_cache = {}  # seq_len -> constant (1, S*D) float32 row

    def _pe_row(self, seq_len: int) -> jax.Array:
        row = self._pe_row_cache.get(seq_len)
        if row is None:
            row = self.pe[:seq_len, :].reshape(1, seq_len * self.d_model)
            self._pe_row_cache[seq_len] = row
        return row

    def __call__(self, x: jax.Array, *, donate_x: bool = False) -> jax.Array:
        B, S, D = x.shape
        assert D == self.d_model, f"d_model mismatch: x has {D}, module has {self.d_model}"
        assert S <= self.max_len, f"seq_len {S} exceeds max_len {self.max_len}"
        return positional_encoding_forward(x, self._pe_row(S), donate_x=donate_x)


if __name__ == "__main__":
    d_model = 20     # matches PositionalEncoding(20, 0)
    B, S = 2, 8
    pe_mod = PositionalEncodingPallas(d_model, dropout=0.0, max_len=64)

    key = jax.random.PRNGKey(0)
    x = jax.random.normal(key, (B, S, d_model), dtype=jnp.float32)

    out = jax.block_until_ready(pe_mod(x))

    # reference check in plain JAX
    ref = x + pe_mod.pe[None, :S, :]
    assert out.shape == (B, S, d_model)
    assert jnp.allclose(out, ref, atol=1e-6), "mismatch vs reference"

    print("KERNEL_OK")
</pallas_src>

<mosaic_0001>
module attributes {stable_mosaic.version = 11 : i64} {
  func.func @_add_pe_kernel(%arg0: i32, %arg1: i32, %arg2: memref<2x160xf32, #tpu.memory_space<vmem>>, %arg3: memref<1x160xf32, #tpu.memory_space<vmem>>, %arg4: memref<2x160xf32, #tpu.memory_space<vmem>>) attributes {dimension_semantics = [#tpu.dimension_semantics<parallel>, #tpu.dimension_semantics<parallel>], iteration_bounds = array<i64: 1, 1>, scalar_prefetch = 0 : i64, scratch_operands = 0 : i64, tpu.core_type = #tpu.core_type<tc>, window_params = [{transform_indices = @transform_0, window_bounds = array<i64: 2, 160>}, {transform_indices = @transform_1, window_bounds = array<i64: 1, 160>}, {transform_indices = @transform_2, window_bounds = array<i64: 2, 160>}]} {
    %c0 = arith.constant 0 : index
    %c0_0 = arith.constant 0 : index
    %0 = vector.load %arg2[%c0, %c0_0] : memref<2x160xf32, #tpu.memory_space<vmem>>, vector<2x160xf32>
    %c0_1 = arith.constant 0 : index
    %c0_2 = arith.constant 0 : index
    %1 = vector.load %arg3[%c0_1, %c0_2] : memref<1x160xf32, #tpu.memory_space<vmem>>, vector<1x160xf32>
    %2 = vector.broadcast %1 : vector<1x160xf32> to vector<2x160xf32>
    %3 = arith.addf %0, %2 : vector<2x160xf32>
    %c0_3 = arith.constant 0 : index
    %c0_4 = arith.constant 0 : index
    %4 = vector.load %arg4[%c0_3, %c0_4] : memref<2x160xf32, #tpu.memory_space<vmem>>, vector<2x160xf32>
    tpu.vector_store %arg4[%c0_3, %c0_4], %3 {strides = array<i32>} : memref<2x160xf32, #tpu.memory_space<vmem>>, vector<2x160xf32>,
    return
  }
  func.func @transform_0(%arg0: i32, %arg1: i32) -> (i32, i32) {
    %c0_i32 = arith.constant 0 : i32
    return %arg1, %arg0 : i32, i32
  }
  func.func @transform_1(%arg0: i32, %arg1: i32) -> (i32, i32) {
    %c0_i32 = arith.constant 0 : i32
    %c0_i32_0 = arith.constant 0 : i32
    return %c0_i32, %arg0 : i32, i32
  }
  func.func @transform_2(%arg0: i32, %arg1: i32) -> (i32, i32) {
    %c0_i32 = arith.constant 0 : i32
    return %arg1, %arg0 : i32, i32
  }
}

</mosaic_0001>

<llo_original>
// kernel: tpu_custom_call.1
$region0: #{tpu_custom_call.1}
  #allocation0 [shape = 'u32[]', space=smem, size = 0x4, offset = 0x4, fixed_abs, tag = 'smem constant byte address 0x4 - core index']
  #allocation1 [shape = 'u32[144,128]{1,0:T(1,128)}', space=vmem, size = 0x12000, scoped, tag = 'internal scratch']
  %s0 = inlined_call_operand.hbm [shape: f32[2,160], index: 0, kind: input, shape index: {}]
  %s1 = inlined_call_operand.hbm [shape: f32[1,160], index: 1, kind: input, shape index: {}]
  %s2 = inlined_call_operand.hbm [shape: f32[2,160], index: 2, kind: output, shape index: {}]
  %s3 = sld [smem:[#allocation0]]
  $region26: #{tpu_custom_call.1} parent=0
    _
  %s5 = ssub.s32 1, %s3
  %s6 = scalar_select 0, %s5, %s3
  $region1: #{tpu_custom_call.1} parent=0
    #allocation2 [shape = 'u8[2048]{0}', space=vmem, size = 0x800, scoped, tag = 'input window, operand 0, single buffered']
    #allocation3 [shape = 's32[1]{0}', space=sflag, size = 0x4, scoped, tag = 'scoped memory for tpu_custom_call.1']
    #allocation4 [shape = 's32[1]{0}', space=sflag, size = 0x4, scoped, tag = 'scoped memory for tpu_custom_call.1']
    #allocation5 [shape = 'u8[1024]{0}', space=vmem, size = 0x400, scoped, tag = 'input window, operand 1, single buffered']
    #allocation6 [shape = 's32[1]{0}', space=sflag, size = 0x4, scoped, tag = 'scoped memory for tpu_custom_call.1']
    #allocation7 [shape = 'u8[2048]{0}', space=vmem, size = 0x800, scoped, tag = 'output window, operand 0, single buffered']
    %7 = vsyncpa [#allocation3], 0
    %8 = vsyncpa [#allocation6], 0
    %9 = vsyncpa [#allocation4], 0
    // Predicated region
    $region2: #{tpu_custom_call.1} parent=1 // pred_check
      _
    $region3: #{tpu_custom_call.1} parent=1 // pred_check_branch
      %11 = sbr.rel (0) target = $region5
    $region4: #{tpu_custom_call.1} parent=1 // pred_region
      %s13 = ssub.s32 64, 64
      %14 = vsyncadd [#allocation3], %s13
      %s16 = sshll.u32 [#allocation2], 4
      %s17 = int_to_ptr.vmem [resolvable:$true] %s16
      %19 = dma.hbm_to_vmem [thread:$0]  %s0, 64, %s17, [#allocation3]
    $region5: #{tpu_custom_call.1} parent=1 // pred_fallthru
      _
    // Predicated region
    $region6: #{tpu_custom_call.1} parent=1 // pred_check
      _
    $region7: #{tpu_custom_call.1} parent=1 // pred_check_branch
      %21 = sbr.rel (0) target = $region9
    $region8: #{tpu_custom_call.1} parent=1 // pred_region
      %s23 = ssub.s32 32, 32
      %24 = vsyncadd [#allocation6], %s23
      %s26 = sshll.u32 [#allocation5], 4
      %s27 = int_to_ptr.vmem [resolvable:$true] %s26
      %29 = dma.hbm_to_vmem [thread:$0]  %s1, 32, %s27, [#allocation6]
    $region9: #{tpu_custom_call.1} parent=1 // pred_fallthru
      _
    // Predicated region
    $region10: #{tpu_custom_call.1} parent=1 // pred_check
      _
    $region11: #{tpu_custom_call.1} parent=1 // pred_check_branch
      %31 = sbr.rel (0) target = $region13
    $region12: #{tpu_custom_call.1} parent=1 // pred_region
      %32 = dma.done [#allocation3], 64
    $region13: #{tpu_custom_call.1} parent=1 // pred_fallthru
      _
    // Predicated region
    $region14: #{tpu_custom_call.1} parent=1 // pred_check
      _
    $region15: #{tpu_custom_call.1} parent=1 // pred_check_branch
      %34 = sbr.rel (0) target = $region17
    $region16: #{tpu_custom_call.1} parent=1 // pred_region
      %35 = dma.done [#allocation6], 32
    $region17: #{tpu_custom_call.1} parent=1 // pred_fallthru
      _
    %v36 = vld [vmem:[#allocation2] sm:$0xf]
    %v37 = vld [vmem:[#allocation5] sm:$0x3]
    %v39 = vlaneseq
    %v40 = vshrl.u32 %v39, 7
    %v41 = vsub.s32 0, %v40
    %v42 = vrot.slane %v37, %v41
    %v43 = vlaneseq
    %v44 = vshrl.u32 %v43, 7
    %v45 = vsub.s32 1, %v44
    %v46 = vrot.slane %v37, %v45
    %v47 = vcombine.low %v42, %v46
    %v49 = vunpack.c.l.s4 1983009808
    %v50 = vunpack.c.0.s8 %v49
    %v51 = vlaneseq
    %v52 = vshrl.u32 %v51, 7
    %v53 = vsub.s32 %v50, %v52
    %v54 = vrot.slane %v47, %v53
    %v56 = vadd.f32 %v36, %v54
    %vm57 = vcmask 1041408
    %vm58 = vcmask 257026
    %vm59 = vmor %vm58, %vm57
    %60 = vst.msk [vmem:[#allocation7] sm:$0xf] %vm59, %v56
    // Predicated region
    $region18: #{tpu_custom_call.1} parent=1 // pred_check
      _
    $region19: #{tpu_custom_call.1} parent=1 // pred_check_branch
      %62 = sbr.rel (0) target = $region21
    $region20: #{tpu_custom_call.1} parent=1 // pred_region
      %s64 = ssub.s32 64, 64
      %65 = vsyncadd [#allocation4], %s64
      %s67 = sshll.u32 [#allocation7], 4
      %s68 = int_to_ptr.vmem [resolvable:$true] %s67
      %70 = dma.vmem_to_hbm [thread:$0]  %s68, 64, %s2, [#allocation4]
    $region21: #{tpu_custom_call.1} parent=1 // pred_fallthru
      _
    // Predicated region
    $region22: #{tpu_custom_call.1} parent=1 // pred_check
      _
    $region23: #{tpu_custom_call.1} parent=1 // pred_check_branch
      %72 = sbr.rel (0) target = $region25
    $region24: #{tpu_custom_call.1} parent=1 // pred_region
      %73 = dma.done [#allocation4], 64
    $region25: #{tpu_custom_call.1} parent=1 // pred_fallthru
      _
    %74 = vsyncpa [#allocation3], 1
    %75 = vsyncpa [#allocation6], 1
    %76 = vsyncpa [#allocation4], 1

</llo_original>
